<compile_context>
chip_gen: v7x
topology: tpu7x:2x2x1
jax: 0.10.0
libtpu: 0.0.40
codegen_flags: <defaults>
</compile_context>

<pallas_src>
import jax
import jax.numpy as jnp
from jax import lax
from jax.experimental import pallas as pl
from jax.experimental.pallas import tpu as pltpu

EPS = 1e-5  # PyTorch BatchNorm2d default


# ---------------------------------------------------------------------------
# Pass 1: fused sub-pixel transposed-conv matmul -> partial BN statistics only.
# ---------------------------------------------------------------------------
def _stats_kernel(f_ref, w_ref, sum_ref, sq_ref):
    # f_ref   : (TP, 4*Cin)      bf16  im2col tap features for TP output pixels
    # w_ref   : (4*Cin, 4*Cout)  bf16  fused phase weight (resident across grid)
    # sum_ref : (1, 1, 4*Cout)   f32   per-tile sum     (per phase*channel)
    # sq_ref  : (1, 1, 4*Cout)   f32   per-tile sum-sq  (per phase*channel)
    y = jnp.dot(f_ref[...], w_ref[...], preferred_element_type=jnp.float32)
    sum_ref[0] = jnp.sum(y, axis=0, keepdims=True)
    sq_ref[0] = jnp.sum(y * y, axis=0, keepdims=True)


# ---------------------------------------------------------------------------
# Pass 2: recompute matmul + folded BatchNorm affine + ReLU (fully fused).
# ---------------------------------------------------------------------------
def _conv_bn_relu_kernel(f_ref, w_ref, scale_ref, shift_ref, o_ref):
    # scale_ref / shift_ref : (1, 4*Cout) f32, broadcast over the TP rows.
    y = jnp.dot(f_ref[...], w_ref[...], preferred_element_type=jnp.float32)
    o_ref[...] = jnp.maximum(y * scale_ref[...] + shift_ref[...], 0.0)


def _phase_weight(weight):
    """weight: (Cin, Cout, 3, 3) in PyTorch ConvTranspose2d layout.
    Returns fused phase weight Wall[(dr*2+dc)*Cin + ci, (ph*2+pw)*Cout + co],
    derived from oh = 2*ih - 1 + kh (stride=2, padding=1)."""
    Cin, Cout = weight.shape[0], weight.shape[1]
    # (output parity, input offset) -> kernel spatial index; (0,1) has no tap.
    k_idx = {(0, 0): 1, (1, 0): 2, (1, 1): 0}
    w_all = jnp.zeros((4 * Cin, 4 * Cout), jnp.float32)
    for ph in range(2):
        for pw in range(2):
            p = ph * 2 + pw
            for dr in range(2):
                for dc in range(2):
                    if (ph, dr) in k_idx and (pw, dc) in k_idx:
                        t = dr * 2 + dc
                        blk = weight[:, :, k_idx[(ph, dr)], k_idx[(pw, dc)]]
                        w_all = w_all.at[t * Cin:(t + 1) * Cin,
                                         p * Cout:(p + 1) * Cout].set(blk)
    return w_all


def conv_bn_relu_up(x_nchw, weight, gamma, beta, *, row_tile=8):
    """x_nchw: (N, Cin, H, W); weight: (Cin, Cout, 3, 3); gamma/beta: (Cout,).
    Returns (N, Cout, 2H, 2W) float32 (training-mode BatchNorm forward)."""
    N, Cin, H, W = x_nchw.shape
    Cin_w, Cout, KH, KW = weight.shape
    assert Cin == Cin_w and KH == 3 and KW == 3
    Ho, Wo = 2 * H, 2 * W
    C4i, C4o = 4 * Cin, 4 * Cout

    # --- im2col of the 2x2 tap neighbourhood of the UNdilated input --------
    x = jnp.transpose(x_nchw, (0, 2, 3, 1)).astype(jnp.float32)        # NHWC
    xe = jnp.pad(x, ((0, 0), (0, 1), (0, 1), (0, 0)))                  # (N,H+1,W+1,Cin)
    feat = jnp.concatenate(
        [xe[:, :H, :W, :], xe[:, :H, 1:, :],
         xe[:, 1:, :W, :], xe[:, 1:, 1:, :]], axis=-1)                 # (N,H,W,4Cin)

    # pad the (n, r) row dimension to a multiple of row_tile (zeros -> no
    # effect on BN partial sums; padded rows are sliced off at the end)
    rows = N * H
    rows_p = pl.cdiv(rows, row_tile) * row_tile
    feat = feat.reshape(rows, W, C4i)
    feat = jnp.pad(feat, ((0, rows_p - rows), (0, 0), (0, 0)))
    f2 = feat.reshape(rows_p * W, C4i).astype(jnp.bfloat16)            # GEMM lhs

    w_all = _phase_weight(weight).astype(jnp.bfloat16)                 # GEMM rhs

    tp = row_tile * W                               # output pixels per grid step
    n_tiles = rows_p // row_tile
    grid = (n_tiles,)

    # Tiles here are tiny; for production shapes pick row_tile so that
    # 2*(tp*C4i*2B) + 2*(tp*C4o*4B) stays well under scoped VMEM
    # (v7x: 64 MiB physical / 32 MiB scoped) and set vmem_limit_bytes.
    params = pltpu.CompilerParams(dimension_semantics=("parallel",))

    # --- pass 1: per-tile BN statistic partials (no activation writeback) ---
    psum, psq = pl.pallas_call(
        _stats_kernel,
        grid=grid,
        in_specs=[
            pl.BlockSpec((tp, C4i), lambda i: (i, 0)),       # im2col features
            pl.BlockSpec((C4i, C4o), lambda i: (0, 0)),      # fused weight (resident)
        ],
        out_specs=[
            pl.BlockSpec((1, 1, C4o), lambda i: (i, 0, 0)),  # per-tile sum
            pl.BlockSpec((1, 1, C4o), lambda i: (i, 0, 0)),  # per-tile sumsq
        ],
        out_shape=[
            jax.ShapeDtypeStruct((n_tiles, 1, C4o), jnp.float32),
            jax.ShapeDtypeStruct((n_tiles, 1, C4o), jnp.float32),
        ],
        compiler_params=params,
    )(f2, w_all)

    # --- fold global batch statistics + gamma/beta into scale/shift (f32) --
    count = jnp.float32(N * Ho * Wo)
    sum_c = jnp.sum(psum, axis=(0, 1)).reshape(4, Cout).sum(axis=0)
    sq_c = jnp.sum(psq, axis=(0, 1)).reshape(4, Cout).sum(axis=0)
    mean = sum_c / count
    var = jnp.maximum(sq_c / count - mean * mean, 0.0)     # biased (train-mode)
    scale = gamma.astype(jnp.float32) * lax.rsqrt(var + EPS)
    shift = beta.astype(jnp.float32) - mean * scale
    scale_row = jnp.tile(scale, 4).reshape(1, C4o)         # column = p*Cout + co
    shift_row = jnp.tile(shift, 4).reshape(1, C4o)
    # TODO(synk): BatchNorm running_mean/running_var state updates (eval mode)
    # are not modeled; only the training-mode forward activation is produced.

    # --- pass 2: recompute matmul, fused affine + ReLU, final writeback -----
    out = pl.pallas_call(
        _conv_bn_relu_kernel,
        grid=grid,
        in_specs=[
            pl.BlockSpec((tp, C4i), lambda i: (i, 0)),       # im2col features
            pl.BlockSpec((C4i, C4o), lambda i: (0, 0)),      # fused weight (resident)
            pl.BlockSpec((1, C4o), lambda i: (0, 0)),        # folded BN scale
            pl.BlockSpec((1, C4o), lambda i: (0, 0)),        # folded BN shift
        ],
        out_specs=pl.BlockSpec((tp, C4o), lambda i: (i, 0)),
        out_shape=jax.ShapeDtypeStruct((rows_p * W, C4o), jnp.float32),
        compiler_params=params,
    )(f2, w_all, scale_row, shift_row)

    # --- sub-pixel interleave back to NCHW (wrapper-side, XLA) --------------
    o = out[:rows * W].reshape(N, H, W, 2, 2, Cout)  # (n, r, c, ph, pw, co)
    o = jnp.transpose(o, (0, 5, 1, 3, 2, 4))         # (n, co, r, ph, c, pw)
    return o.reshape(N, Cout, Ho, Wo)


def _reference(x_nchw, weight, gamma, beta):
    """Pure-JAX reference (XLA dilated conv), with the same bf16-rounded
    matmul operands as the kernel so the comparison is tight."""
    N, Cin, H, W = x_nchw.shape
    Cout = weight.shape[1]
    x = jnp.transpose(x_nchw, (0, 2, 3, 1)).astype(jnp.bfloat16).astype(jnp.float32)
    w_conv = jnp.transpose(weight[:, :, ::-1, ::-1], (2, 3, 0, 1))
    w_conv = w_conv.astype(jnp.bfloat16).astype(jnp.float32)
    y = lax.conv_general_dilated(
        x, w_conv, window_strides=(1, 1), padding=((1, 2), (1, 2)),
        lhs_dilation=(2, 2), rhs_dilation=(1, 1),
        dimension_numbers=("NHWC", "HWIO", "NHWC"))
    mean = jnp.mean(y, axis=(0, 1, 2), keepdims=True)
    var = jnp.mean((y - mean) ** 2, axis=(0, 1, 2), keepdims=True)
    y = (y - mean) * lax.rsqrt(var + EPS) * gamma.reshape(1, 1, 1, Cout) \
        + beta.reshape(1, 1, 1, Cout)
    y = jnp.maximum(y, 0.0)
    return jnp.transpose(y, (0, 3, 1, 2))


if __name__ == "__main__":
    key = jax.random.PRNGKey(0)
    k_x, k_w, k_g, k_b = jax.random.split(key, 4)

    N, Cin, H, W = 2, 4, 16, 16
    Cout = 8

    x = jax.random.normal(k_x, (N, Cin, H, W), jnp.float32)
    # ConvTranspose2d weight layout: (in_channels, out_channels, kH, kW)
    w = 0.1 * jax.random.normal(k_w, (Cin, Cout, 3, 3), jnp.float32)
    gamma = 1.0 + 0.1 * jax.random.normal(k_g, (Cout,), jnp.float32)
    beta = 0.05 * jax.random.normal(k_b, (Cout,), jnp.float32)

    out = conv_bn_relu_up(x, w, gamma, beta)
    jax.block_until_ready(out)

    ref = _reference(x, w, gamma, beta)
    assert out.shape == (N, Cout, 2 * H, 2 * W), out.shape
    err = float(jnp.max(jnp.abs(out - ref)))
    assert err < 2e-3, err

    print("KERNEL_OK")
</pallas_src>

<mosaic_0001>
module attributes {stable_mosaic.version = 11 : i64} {
  func.func @_stats_kernel(%arg0: i32, %arg1: memref<128x16xbf16, #tpu.memory_space<vmem>>, %arg2: memref<16x32xbf16, #tpu.memory_space<vmem>>, %arg3: memref<1x1x32xf32, #tpu.memory_space<vmem>>, %arg4: memref<1x1x32xf32, #tpu.memory_space<vmem>>) attributes {dimension_semantics = [#tpu.dimension_semantics<parallel>], iteration_bounds = array<i64: 4>, scalar_prefetch = 0 : i64, scratch_operands = 0 : i64, tpu.core_type = #tpu.core_type<tc>, window_params = [{transform_indices = @transform_0, window_bounds = array<i64: 128, 16>}, {pipeline_mode = #tpu.pipeline_mode<synchronous>, transform_indices = @transform_1, window_bounds = array<i64: 16, 32>}, {transform_indices = @transform_2, window_bounds = array<i64: 1, 1, 32>}, {transform_indices = @transform_3, window_bounds = array<i64: 1, 1, 32>}]} {
    %c0 = arith.constant 0 : index
    %c0_0 = arith.constant 0 : index
    %0 = vector.load %arg1[%c0, %c0_0] : memref<128x16xbf16, #tpu.memory_space<vmem>>, vector<128x16xbf16>
    %c0_1 = arith.constant 0 : index
    %c0_2 = arith.constant 0 : index
    %1 = vector.load %arg2[%c0_1, %c0_2] : memref<16x32xbf16, #tpu.memory_space<vmem>>, vector<16x32xbf16>
    %cst = arith.constant dense<0.000000e+00> : vector<128x32xf32>
    %2 = tpu.matmul %0, %1, %cst {dimension_numbers = #tpu.dot_dimension_numbers<[1], [0], [0], [1], [0, 0, 1, 1], [], []>} : vector<128x16xbf16>, vector<16x32xbf16>, vector<128x32xf32> -> vector<128x32xf32>
    %cst_3 = arith.constant dense<0.000000e+00> : vector<32xf32>
    %3 = vector.multi_reduction <add>, %2, %cst_3 [0] : vector<128x32xf32> to vector<32xf32>
    %4 = vector.shape_cast %3 : vector<32xf32> to vector<1x32xf32>
    %c0_4 = arith.constant 0 : index
    %c0_5 = arith.constant 0 : index
    %c0_6 = arith.constant 0 : index
    %5 = vector.load %arg3[%c0_4, %c0_5, %c0_6] : memref<1x1x32xf32, #tpu.memory_space<vmem>>, vector<1x1x32xf32>
    %6 = vector.shape_cast %5 : vector<1x1x32xf32> to vector<1x32xf32>
    %7 = vector.shape_cast %4 : vector<1x32xf32> to vector<1x1x32xf32>
    tpu.vector_store %arg3[%c0_4, %c0_5, %c0_6], %7 {strides = array<i32>} : memref<1x1x32xf32, #tpu.memory_space<vmem>>, vector<1x1x32xf32>,
    %8 = arith.mulf %2, %2 : vector<128x32xf32>
    %cst_7 = arith.constant dense<0.000000e+00> : vector<32xf32>
    %9 = vector.multi_reduction <add>, %8, %cst_7 [0] : vector<128x32xf32> to vector<32xf32>
    %10 = vector.shape_cast %9 : vector<32xf32> to vector<1x32xf32>
    %c0_8 = arith.constant 0 : index
    %c0_9 = arith.constant 0 : index
    %c0_10 = arith.constant 0 : index
    %11 = vector.load %arg4[%c0_8, %c0_9, %c0_10] : memref<1x1x32xf32, #tpu.memory_space<vmem>>, vector<1x1x32xf32>
    %12 = vector.shape_cast %11 : vector<1x1x32xf32> to vector<1x32xf32>
    %13 = vector.shape_cast %10 : vector<1x32xf32> to vector<1x1x32xf32>
    tpu.vector_store %arg4[%c0_8, %c0_9, %c0_10], %13 {strides = array<i32>} : memref<1x1x32xf32, #tpu.memory_space<vmem>>, vector<1x1x32xf32>,
    return
  }
  func.func @transform_0(%arg0: i32) -> (i32, i32) {
    %c0_i32 = arith.constant 0 : i32
    %c0_i32_0 = arith.constant 0 : i32
    return %arg0, %c0_i32 : i32, i32
  }
  func.func @transform_1(%arg0: i32) -> (i32, i32) {
    %c0_i32 = arith.constant 0 : i32
    %c0_i32_0 = arith.constant 0 : i32
    %c0_i32_1 = arith.constant 0 : i32
    return %c0_i32, %c0_i32_0 : i32, i32
  }
  func.func @transform_2(%arg0: i32) -> (i32, i32, i32) {
    %c0_i32 = arith.constant 0 : i32
    %c0_i32_0 = arith.constant 0 : i32
    %c0_i32_1 = arith.constant 0 : i32
    return %arg0, %c0_i32, %c0_i32_0 : i32, i32, i32
  }
  func.func @transform_3(%arg0: i32) -> (i32, i32, i32) {
    %c0_i32 = arith.constant 0 : i32
    %c0_i32_0 = arith.constant 0 : i32
    %c0_i32_1 = arith.constant 0 : i32
    return %arg0, %c0_i32, %c0_i32_0 : i32, i32, i32
  }
}

</mosaic_0001>

<llo_original>
// kernel: tpu_custom_call.1
$region0: #{tpu_custom_call.1}
  #allocation0 [shape = 'u32[]', space=smem, size = 0x4, offset = 0x4, fixed_abs, tag = 'smem constant byte address 0x4 - core index']
  #allocation1 [shape = 'u32[144,128]{1,0:T(1,128)}', space=vmem, size = 0x12000, scoped, tag = 'internal scratch']
  %s0 = inlined_call_operand.vmem [shape: bf16[512,16], index: 0, kind: input, shape index: {}]
  %s1 = inlined_call_operand.vmem [shape: bf16[16,32], index: 1, kind: input, shape index: {}]
  %s2 = inlined_call_operand.hbm [shape: f32[4,1,32], index: 2, kind: output, shape index: {0}]
  %s3 = inlined_call_operand.hbm [shape: f32[4,1,32], index: 3, kind: output, shape index: {1}]
  %4 = xla_tuple %s2, %s3
  %s5 = sld [smem:[#allocation0]]
  $region49: #{tpu_custom_call.1} parent=0
    _
  %s7 = ssub.s32 1, %s5
  %s8 = scalar_select 0, %s7, %s5
  $region1: #{tpu_custom_call.1} parent=0
    #allocation2 [shape = 'u8[1024]{0}', space=vmem, size = 0x400, scoped, tag = 'output window, operand 0']
    #allocation3 [shape = 's32[2]{0}', space=sflag, size = 0x8, scoped, tag = 'scoped memory for tpu_custom_call.1']
    #allocation4 [shape = 'u8[1024]{0}', space=vmem, size = 0x400, scoped, tag = 'output window, operand 1']
    #allocation5 [shape = 's32[2]{0}', space=sflag, size = 0x8, scoped, tag = 'scoped memory for tpu_custom_call.1']
    %9 = vsyncpa [#allocation3], 0
    %s10 = scalar_lea.sflag [#allocation3], 1
    %11 = vsyncpa %s10, 0
    %12 = vsyncpa [#allocation5], 0
    %s13 = scalar_lea.sflag [#allocation5], 1
    %14 = vsyncpa %s13, 0
    loop: start=0, step=1, limit=6
    $region2: #{tpu_custom_call.1} parent=1 // loop_pre_header
      _
    $region3: #{tpu_custom_call.1} parent=1 // loop_header
      %s16 = sphi 0, %s20
      %p17 = scmp.ge.s32.totalorder %s16, 6
      %s26 = sphi 0, %s28
      %s29 = sphi 0, %s26
      %s30 = sphi 0, %s29
      %s46 = sphi 0, %s30
      %s50 = sphi 0, %s50
      %s52 = sphi 0, %s50
      %s53 = sphi 0, %s52
      %s67 = sphi 0, %s53
      %s73 = sphi 0, %s75
      %s76 = sphi 0, %s73
      %s77 = sphi 0, %s76
      %s93 = sphi 0, %s77
      %s99 = sphi 0, %s101
      %s102 = sphi 0, %s99
      %s103 = sphi 0, %s102
      %s119 = sphi 0, %s103
    $region4: #{tpu_custom_call.1} parent=1 // loop_header_branch
      %19 = sbr.rel (%p17) target = $region8
    $region5: #{tpu_custom_call.1} parent=1 // loop_body
      %s21 = ssub.s32 %s16, 1
      %s22 = ssub.s32 %s16, 2
      %s23 = sadd.s32 %s16, 1
      %s24 = ssub.s32 %s16, %s23
      %p25 = scmp.eq.s32.totalorder %s24, 0
      %s27 = sadd.s32 %s26, 1
      %s28 = scalar_select %p25, %s26, %s27
      %p31 = pneg %p25
      %p32 = scmp.eq.s32.totalorder %s16, 3
      %p33 = por %p31, %p32
      %p34 = scmp.ne.s32.totalorder %s26, %s29
      %p35 = scmp.eq.s32.totalorder %s16, 0
      %p36 = por %p34, %p35
      %p37 = scmp.ne.s32.totalorder %s26, %s29
      %p38 = scmp.eq.s32.totalorder %s21, 3
      %p39 = por %p37, %p38
      %p40 = scmp.ne.s32.totalorder %s29, %s30
      %p41 = scmp.eq.s32.totalorder %s21, 0
      %p42 = por %p40, %p41
      %p43 = scmp.ne.s32.totalorder %s29, %s30
      %p44 = scmp.eq.s32.totalorder %s22, 3
      %p45 = por %p43, %p44
      %p47 = scmp.ne.s32.totalorder %s30, %s46
      %p48 = scmp.eq.s32.totalorder %s22, 0
      %p49 = por %p47, %p48
      %s51 = sadd.s32 %s50, 1
      %p54 = scmp.eq.s32.totalorder %s16, 3
      %p55 = scmp.ne.s32.totalorder %s50, %s52
      %p56 = scmp.eq.s32.totalorder %s16, 0
      %p57 = por %p55, %p56
      %p58 = scmp.ne.s32.totalorder %s50, %s52
      %p59 = scmp.eq.s32.totalorder %s21, 3
      %p60 = por %p58, %p59
      %p61 = scmp.ne.s32.totalorder %s52, %s53
      %p62 = scmp.eq.s32.totalorder %s21, 0
      %p63 = por %p61, %p62
      %p64 = scmp.ne.s32.totalorder %s52, %s53
      %p65 = scmp.eq.s32.totalorder %s22, 3
      %p66 = por %p64, %p65
      %p68 = scmp.ne.s32.totalorder %s53, %s67
      %p69 = scmp.eq.s32.totalorder %s22, 0
      %p70 = por %p68, %p69
      %s71 = ssub.s32 %s16, %s23
      %p72 = scmp.eq.s32.totalorder %s71, 0
      %s74 = sadd.s32 %s73, 1
      %s75 = scalar_select %p72, %s73, %s74
      %p78 = pneg %p72
      %p79 = scmp.eq.s32.totalorder %s16, 3
      %p80 = por %p78, %p79
      %p81 = scmp.ne.s32.totalorder %s73, %s76
      %p82 = scmp.eq.s32.totalorder %s16, 0
      %p83 = por %p81, %p82
      %p84 = scmp.ne.s32.totalorder %s73, %s76
      %p85 = scmp.eq.s32.totalorder %s21, 3
      %p86 = por %p84, %p85
      %p87 = scmp.ne.s32.totalorder %s76, %s77
      %p88 = scmp.eq.s32.totalorder %s21, 0
      %p89 = por %p87, %p88
      %p90 = scmp.ne.s32.totalorder %s76, %s77
      %p91 = scmp.eq.s32.totalorder %s22, 3
      %p92 = por %p90, %p91
      %p94 = scmp.ne.s32.totalorder %s77, %s93
      %p95 = scmp.eq.s32.totalorder %s22, 0
      %p96 = por %p94, %p95
      %s97 = ssub.s32 %s16, %s23
      %p98 = scmp.eq.s32.totalorder %s97, 0
      %s100 = sadd.s32 %s99, 1
      %s101 = scalar_select %p98, %s99, %s100
      %p104 = pneg %p98
      %p105 = scmp.eq.s32.totalorder %s16, 3
      %p106 = por %p104, %p105
      %p107 = scmp.ne.s32.totalorder %s99, %s102
      %p108 = scmp.eq.s32.totalorder %s16, 0
      %p109 = por %p107, %p108
      %p110 = scmp.ne.s32.totalorder %s99, %s102
      %p111 = scmp.eq.s32.totalorder %s21, 3
      %p112 = por %p110, %p111
      %p113 = scmp.ne.s32.totalorder %s102, %s103
      %p114 = scmp.eq.s32.totalorder %s21, 0
      %p115 = por %p113, %p114
      %p116 = scmp.ne.s32.totalorder %s102, %s103
      %p117 = scmp.eq.s32.totalorder %s22, 3
      %p118 = por %p116, %p117
      %p120 = scmp.ne.s32.totalorder %s103, %s119
      %p121 = scmp.eq.s32.totalorder %s22, 0
      %p122 = por %p120, %p121
      %p123 = scmp.le.s32.totalorder 1, %s16
      %p124 = scmp.lt.s32.totalorder %s16, 5
      %p125 = pnand %p123, %p124
      %p126 = pneg %p125
      // Predicated region
      $region9: #{tpu_custom_call.1} parent=5 // pred_check
        _
      $region10: #{tpu_custom_call.1} parent=5 // pred_check_branch
        %128 = sbr.rel (%p125) target = $region12
      $region11: #{tpu_custom_call.1} parent=5 // pred_region
        %s129 = ssub.s32 %s16, 1
        // Predicated region
        $region13: #{tpu_custom_call.1} parent=11 // pred_check
          %p130 = pneg %p63
        $region14: #{tpu_custom_call.1} parent=11 // pred_check_branch
          %132 = sbr.rel (%p130) target = $region16
        $region15: #{tpu_custom_call.1} parent=11 // pred_region
          _
        $region16: #{tpu_custom_call.1} parent=11 // pred_fallthru
          _
      $region12: #{tpu_custom_call.1} parent=5 // pred_fallthru
        _
      %p133 = scmp.lt.s32.totalorder %s16, 4
      // Predicated region
      $region17: #{tpu_custom_call.1} parent=5 // pred_check
        %p134 = pneg %p133
      $region18: #{tpu_custom_call.1} parent=5 // pred_check_branch
        %136 = sbr.rel (%p134) target = $region20
      $region19: #{tpu_custom_call.1} parent=5 // pred_region
        // Predicated region
        $region21: #{tpu_custom_call.1} parent=19 // pred_check
          %p137 = pneg %p36
        $region22: #{tpu_custom_call.1} parent=19 // pred_check_branch
          %139 = sbr.rel (%p137) target = $region24
        $region23: #{tpu_custom_call.1} parent=19 // pred_region
          %s140 = smul.u32 16, %s16
          %p141 = scmp.lt.s32.totalorder %s140, 63
          %s142 = scalar_select %p141, %s140, 63
          %s143 = smul.addr %s142, 4
          %s144 = scalar_lea.vmem %s0, %s143
          %s145 = smul.u32 16, %s16
        $region24: #{tpu_custom_call.1} parent=19 // pred_fallthru
          _
      $region20: #{tpu_custom_call.1} parent=5 // pred_fallthru
        _
      %p146 = scmp.le.s32.totalorder 1, %s16
      %p147 = scmp.lt.s32.totalorder %s16, 5
      %p148 = pnand %p146, %p147
      %p149 = pneg %p148
      // Predicated region
      $region25: #{tpu_custom_call.1} parent=5 // pred_check
        _
      $region26: #{tpu_custom_call.1} parent=5 // pred_check_branch
        %151 = sbr.rel (%p148) target = $region28
      $region27: #{tpu_custom_call.1} parent=5 // pred_region
        %s152 = ssub.s32 %s16, 1
        %s153 = smul.u32 16, %s21
        %p154 = scmp.lt.s32.totalorder %s153, 63
        %s155 = scalar_select %p154, %s153, 63
        %s156 = smul.addr %s155, 4
        %s157 = scalar_lea.vmem %s0, %s156
        %p158 = pneg %p42
        %p159 = pneg %p39
        %p160 = pneg %p63
        %p161 = pneg %p60
        %p162 = pneg %p89
        %p163 = pneg %p86
        %s164 = sand.u32 %s76, 1
        %s165 = scalar_lea.sflag [#allocation3], %s164
        %s166 = sand.u32 %s76, 1
        %s167 = scalar_lea.vmem [#allocation2], %s166
        %p168 = pneg %p115
        %p169 = pneg %p112
        %s170 = sand.u32 %s102, 1
        %s171 = scalar_lea.sflag [#allocation5], %s170
        %s172 = sand.u32 %s102, 1
        %s173 = scalar_lea.vmem [#allocation4], %s172
        %s174 = smul.u32 16, %s21
        %p175 = scmp.lt.s32.totalorder %s174, 63
        %s176 = scalar_select %p175, %s174, 63
        %s177 = smul.addr %s176, 4
        %s178 = scalar_lea.vmem %s0, %s177
        %s179 = smul.u32 16, %s21
        %v181 = vld [vmem:[%s178] sm:$0xf]
        %v182 = vld [vmem:[%s178 + $0x4] sm:$0xf]
        %v183 = vld [vmem:[%s178 + $0x8] sm:$0xf]
        %v184 = vld [vmem:[%s178 + $0xc] sm:$0xf]
        %v185 = vld [vmem:[%s178 + $0x10] sm:$0xf]
        %v186 = vld [vmem:[%s178 + $0x14] sm:$0xf]
        %v187 = vld [vmem:[%s178 + $0x18] sm:$0xf]
        %v188 = vld [vmem:[%s178 + $0x1c] sm:$0xf]
        %v189 = vld [vmem:[%s178 + $0x20] sm:$0xf]
        %v190 = vld [vmem:[%s178 + $0x24] sm:$0xf]
        %v191 = vld [vmem:[%s178 + $0x28] sm:$0xf]
        %v192 = vld [vmem:[%s178 + $0x2c] sm:$0xf]
        %v193 = vld [vmem:[%s178 + $0x30] sm:$0xf]
        %v194 = vld [vmem:[%s178 + $0x34] sm:$0xf]
        %v195 = vld [vmem:[%s178 + $0x38] sm:$0xf]
        %v196 = vld [vmem:[%s178 + $0x3c] sm:$0xf]
        %v197 = vld [vmem:[%s1] sm:$0xf]
        %v198 = vld [vmem:[%s1 + $0x4] sm:$0xf]
        %v215 = vunpack.c.l.b16 %v181
        %v216 = vunpack.c.l.b16 %v182
        %v217 = vunpack.c.l.b16 %v183
        %v218 = vunpack.c.l.b16 %v184
        %v219 = vunpack.c.l.b16 %v185
        %v220 = vunpack.c.l.b16 %v186
        %v221 = vunpack.c.l.b16 %v187
        %v222 = vunpack.c.l.b16 %v188
        %v223 = vunpack.c.l.b16 %v189
        %v224 = vunpack.c.l.b16 %v190
        %v225 = vunpack.c.l.b16 %v191
        %v226 = vunpack.c.l.b16 %v192
        %v227 = vunpack.c.l.b16 %v193
        %v228 = vunpack.c.l.b16 %v194
        %v229 = vunpack.c.l.b16 %v195
        %v230 = vunpack.c.l.b16 %v196
        %v231 = vpack.c.b16 %v216, %v215
        %v232 = vpack.c.b16 %v218, %v217
        %v233 = vpack.c.b16 %v220, %v219
        %v234 = vpack.c.b16 %v222, %v221
        %v235 = vpack.c.b16 %v224, %v223
        %v236 = vpack.c.b16 %v226, %v225
        %v237 = vpack.c.b16 %v228, %v227
        %v238 = vpack.c.b16 %v230, %v229
        %v241 = vunpack.c.l.b16 %v197
        %v242 = vunpack.c.l.b16 %v198
        %v243 = vpack.c.b16 %v242, %v241
        %vm245 = vcmask 130048
        %v247 = vsel %vm245, %v231, 0
        %v250 = vsel %vm245, %v232, 0
        %v253 = vsel %vm245, %v233, 0
        %v256 = vsel %vm245, %v234, 0
        %v259 = vsel %vm245, %v235, 0
        %v262 = vsel %vm245, %v236, 0
        %v265 = vsel %vm245, %v237, 0
        %v268 = vsel %vm245, %v238, 0
        %270 = vmatprep.subr.bf16.mxu0 0
        %271 = vmatpush1.bf16.msra.mxu0 %v243
        %272 = vmatprep.subr.bf16.mxu0 0
        %273 = vmatpush1.bf16.msra.mxu0 0
        %274 = vmatprep.subr.bf16.mxu0 0
        %275 = vmatpush1.bf16.msra.mxu0 0
        %276 = vmatprep.subr.bf16.mxu0 0
        %277 = vmatpush1.bf16.msra.mxu0 0
        %278 = vmatprep.subr.bf16.mxu0 0
        %279 = vmatpush1.bf16.msra.mxu0 0
        %280 = vmatprep.subr.bf16.mxu0 0
        %281 = vmatpush1.bf16.msra.mxu0 0
        %282 = vmatprep.subr.bf16.mxu0 0
        %283 = vmatpush1.bf16.msra.mxu0 0
        %284 = vmatprep.subr.bf16.mxu0 0
        %285 = vmatpush1.bf16.msra.mxu0 0
        %286 = vmatprep.subr.bf16.mxu0 0
        %287 = vmatpush1.bf16.msra.mxu0 0
        %288 = vmatprep.subr.bf16.mxu0 0
        %289 = vmatpush1.bf16.msra.mxu0 0
        %290 = vmatprep.subr.bf16.mxu0 0
        %291 = vmatpush1.bf16.msra.mxu0 0
        %292 = vmatprep.subr.bf16.mxu0 0
        %293 = vmatpush1.bf16.msra.mxu0 0
        %294 = vmatprep.subr.bf16.mxu0 0
        %295 = vmatpush1.bf16.msra.mxu0 0
        %296 = vmatprep.subr.bf16.mxu0 0
        %297 = vmatpush1.bf16.msra.mxu0 0
        %298 = vmatprep.subr.bf16.mxu0 0
        %299 = vmatpush1.bf16.msra.mxu0 0
        %300 = vmatprep.subr.bf16.mxu0 0
        %301 = vmatpush1.bf16.msra.mxu0 0
        %302 = vmatprep.mubr.bf16.mxu0 0
        %303 = vmatmul.mubr.bf16.gmra.mrb[0].mxu0 %v247
        %v304 = vpop.f32.mrb[0].mxu0
        %v305 = vadd.f32 0.0, %v304
        %v306 = vpop.f32.mrb[0].mxu0
        %v307 = vpop.f32.mrb[0].mxu0
        %v308 = vadd.f32 0.0, %v307
        %v309 = vpop.f32.mrb[0].mxu0
        %310 = vmatprep.mubr.bf16.mxu0 0
        %311 = vmatmul.mubr.bf16.gmra.mrb[0].mxu0 %v250
        %v312 = vpop.f32.mrb[0].mxu0
        %v313 = vadd.f32 0.0, %v312
        %v314 = vpop.f32.mrb[0].mxu0
        %v315 = vpop.f32.mrb[0].mxu0
        %v316 = vadd.f32 0.0, %v315
        %v317 = vpop.f32.mrb[0].mxu0
        %318 = vmatprep.mubr.bf16.mxu0 0
        %319 = vmatmul.mubr.bf16.gmra.mrb[0].mxu0 %v253
        %v320 = vpop.f32.mrb[0].mxu0
        %v321 = vadd.f32 0.0, %v320
        %v322 = vpop.f32.mrb[0].mxu0
        %v323 = vpop.f32.mrb[0].mxu0
        %v324 = vadd.f32 0.0, %v323
        %v325 = vpop.f32.mrb[0].mxu0
        %326 = vmatprep.mubr.bf16.mxu0 0
        %327 = vmatmul.mubr.bf16.gmra.mrb[0].mxu0 %v256
        %v328 = vpop.f32.mrb[0].mxu0
        %v329 = vadd.f32 0.0, %v328
        %v330 = vpop.f32.mrb[0].mxu0
        %v331 = vpop.f32.mrb[0].mxu0
        %v332 = vadd.f32 0.0, %v331
        %v333 = vpop.f32.mrb[0].mxu0
        %334 = vmatprep.mubr.bf16.mxu0 0
        %335 = vmatmul.mubr.bf16.gmra.mrb[0].mxu0 %v259
        %v336 = vpop.f32.mrb[0].mxu0
        %v337 = vadd.f32 0.0, %v336
        %v338 = vpop.f32.mrb[0].mxu0
        %v339 = vpop.f32.mrb[0].mxu0
        %v340 = vadd.f32 0.0, %v339
        %v341 = vpop.f32.mrb[0].mxu0
        %342 = vmatprep.mubr.bf16.mxu0 0
        %343 = vmatmul.mubr.bf16.gmra.mrb[0].mxu0 %v262
        %v344 = vpop.f32.mrb[0].mxu0
        %v345 = vadd.f32 0.0, %v344
        %v346 = vpop.f32.mrb[0].mxu0
        %v347 = vpop.f32.mrb[0].mxu0
        %v348 = vadd.f32 0.0, %v347
        %v349 = vpop.f32.mrb[0].mxu0
        %350 = vmatprep.mubr.bf16.mxu0 0
        %351 = vmatmul.mubr.bf16.gmra.mrb[0].mxu0 %v265
        %v352 = vpop.f32.mrb[0].mxu0
        %v353 = vadd.f32 0.0, %v352
        %v354 = vpop.f32.mrb[0].mxu0
        %v355 = vpop.f32.mrb[0].mxu0
        %v356 = vadd.f32 0.0, %v355
        %v357 = vpop.f32.mrb[0].mxu0
        %358 = vmatprep.mubr.bf16.mxu0 0
        %359 = vmatmul.mubr.bf16.gmra.mrb[0].mxu0 %v268
        %v360 = vpop.f32.mrb[0].mxu0
        %v361 = vadd.f32 0.0, %v360
        %v362 = vpop.f32.mrb[0].mxu0
        %v363 = vpop.f32.mrb[0].mxu0
        %v364 = vadd.f32 0.0, %v363
        %v365 = vpop.f32.mrb[0].mxu0
        %366 = vdwg.mxu0
        %vm367 = vcmask 261120
        %v368 = vsel %vm367, %v305, 0.0
        %v369 = vsel %vm367, %v308, 0.0
        %v370 = vadd.f32 %v368, %v369
        %v371 = vsel %vm367, %v313, 0.0
        %v372 = vadd.f32 %v370, %v371
        %v373 = vsel %vm367, %v316, 0.0
        %v374 = vadd.f32 %v372, %v373
        %v375 = vsel %vm367, %v321, 0.0
        %v376 = vadd.f32 %v374, %v375
        %v377 = vsel %vm367, %v324, 0.0
        %v378 = vadd.f32 %v376, %v377
        %v379 = vsel %vm367, %v329, 0.0
        %v380 = vadd.f32 %v378, %v379
        %v381 = vsel %vm367, %v332, 0.0
        %v382 = vadd.f32 %v380, %v381
        %v383 = vsel %vm367, %v337, 0.0
        %v384 = vadd.f32 %v382, %v383
        %v385 = vsel %vm367, %v340, 0.0
        %v386 = vadd.f32 %v384, %v385
        %v387 = vsel %vm367, %v345, 0.0
        %v388 = vadd.f32 %v386, %v387
        %v389 = vsel %vm367, %v348, 0.0
        %v390 = vadd.f32 %v388, %v389
        %v391 = vsel %vm367, %v353, 0.0
        %v392 = vadd.f32 %v390, %v391
        %v393 = vsel %vm367, %v356, 0.0
        %v394 = vadd.f32 %v392, %v393
        %v395 = vsel %vm367, %v361, 0.0
        %v396 = vadd.f32 %v394, %v395
        %v397 = vsel %vm367, %v364, 0.0
        %v398 = vadd.f32 %v396, %v397
        %v399 = vrot.slane %v398, 4
        %v400 = vadd.f32 %v398, %v399
        %v401 = vrot.slane %v400, 2
        %v402 = vadd.f32 %v400, %v401
        %v403 = vrot.slane %v402, 1
        %v404 = vadd.f32 %v402, %v403
        %vm405 = vcmask 253952
        %406 = vst.msk [vmem:[%s167] sm:$0x1] %vm405, %v404
        %v407 = vmul.f32 %v305, %v305
        %v408 = vmul.f32 %v308, %v308
        %v409 = vmul.f32 %v313, %v313
        %v410 = vmul.f32 %v316, %v316
        %v411 = vmul.f32 %v321, %v321
        %v412 = vmul.f32 %v324, %v324
        %v413 = vmul.f32 %v329, %v329
        %v414 = vmul.f32 %v332, %v332
        %v415 = vmul.f32 %v337, %v337
        %v416 = vmul.f32 %v340, %v340
        %v417 = vmul.f32 %v345, %v345
        %v418 = vmul.f32 %v348, %v348
        %v419 = vmul.f32 %v353, %v353
        %v420 = vmul.f32 %v356, %v356
        %v421 = vmul.f32 %v361, %v361
        %v422 = vmul.f32 %v364, %v364
        %v423 = vsel %vm367, %v407, 0.0
        %v424 = vsel %vm367, %v408, 0.0
        %v425 = vadd.f32 %v423, %v424
        %v426 = vsel %vm367, %v409, 0.0
        %v427 = vadd.f32 %v425, %v426
        %v428 = vsel %vm367, %v410, 0.0
        %v429 = vadd.f32 %v427, %v428
        %v430 = vsel %vm367, %v411, 0.0
        %v431 = vadd.f32 %v429, %v430
        %v432 = vsel %vm367, %v412, 0.0
        %v433 = vadd.f32 %v431, %v432
        %v434 = vsel %vm367, %v413, 0.0
        %v435 = vadd.f32 %v433, %v434
        %v436 = vsel %vm367, %v414, 0.0
        %v437 = vadd.f32 %v435, %v436
        %v438 = vsel %vm367, %v415, 0.0
        %v439 = vadd.f32 %v437, %v438
        %v440 = vsel %vm367, %v416, 0.0
        %v441 = vadd.f32 %v439, %v440
        %v442 = vsel %vm367, %v417, 0.0
        %v443 = vadd.f32 %v441, %v442
        %v444 = vsel %vm367, %v418, 0.0
        %v445 = vadd.f32 %v443, %v444
        %v446 = vsel %vm367, %v419, 0.0
        %v447 = vadd.f32 %v445, %v446
        %v448 = vsel %vm367, %v420, 0.0
        %v449 = vadd.f32 %v447, %v448
        %v450 = vsel %vm367, %v421, 0.0
        %v451 = vadd.f32 %v449, %v450
        %v452 = vsel %vm367, %v422, 0.0
        %v453 = vadd.f32 %v451, %v452
        %v454 = vrot.slane %v453, 4
        %v455 = vadd.f32 %v453, %v454
        %v456 = vrot.slane %v455, 2
        %v457 = vadd.f32 %v455, %v456
        %v458 = vrot.slane %v457, 1
        %v459 = vadd.f32 %v457, %v458
        %460 = vst.msk [vmem:[%s173] sm:$0x1] %vm405, %v459
        %s461 = sand.u32 %s76, 1
        %s462 = scalar_lea.sflag [#allocation3], %s461
        %s463 = sand.u32 %s76, 1
        %s464 = scalar_lea.vmem [#allocation2], %s463
        %s465 = sand.u32 %s102, 1
        %s466 = scalar_lea.sflag [#allocation5], %s465
        %s467 = sand.u32 %s102, 1
        %s468 = scalar_lea.vmem [#allocation4], %s467
        // Predicated region
        $region29: #{tpu_custom_call.1} parent=27 // pred_check
          %p469 = pneg %p86
        $region30: #{tpu_custom_call.1} parent=27 // pred_check_branch
          %471 = sbr.rel (%p469) target = $region32
        $region31: #{tpu_custom_call.1} parent=27 // pred_region
          %s473 = ssub.s32 16, 16
          %474 = vsyncadd %s462, %s473
          %s475 = smul.addr %s21, 16
          %s476 = scalar_lea.hbm %s2, %s475
          %s478 = sshll.u32 %s464, 4
          %s479 = int_to_ptr.vmem [resolvable:$true] %s478
          %481 = dma.vmem_to_hbm [thread:$0]  %s479, 16, %s476, %s462
        $region32: #{tpu_custom_call.1} parent=27 // pred_fallthru
          _
        // Predicated region
        $region33: #{tpu_custom_call.1} parent=27 // pred_check
          %p482 = pneg %p112
        $region34: #{tpu_custom_call.1} parent=27 // pred_check_branch
          %484 = sbr.rel (%p482) target = $region36
        $region35: #{tpu_custom_call.1} parent=27 // pred_region
          %s486 = ssub.s32 16, 16
          %487 = vsyncadd %s466, %s486
          %s488 = smul.addr %s21, 16
          %s489 = scalar_lea.hbm %s3, %s488
          %s491 = sshll.u32 %s468, 4
          %s492 = int_to_ptr.vmem [resolvable:$true] %s491
          %494 = dma.vmem_to_hbm [thread:$0]  %s492, 16, %s489, %s466
        $region36: #{tpu_custom_call.1} parent=27 // pred_fallthru
          _
      $region28: #{tpu_custom_call.1} parent=5 // pred_fallthru
        _
      %p495 = scmp.le.s32.totalorder 2, %s16
      // Predicated region
      $region37: #{tpu_custom_call.1} parent=5 // pred_check
        %p496 = pneg %p495
      $region38: #{tpu_custom_call.1} parent=5 // pred_check_branch
        %498 = sbr.rel (%p496) target = $region40
      $region39: #{tpu_custom_call.1} parent=5 // pred_region
        %s499 = ssub.s32 %s16, 2
        // Predicated region
        $region41: #{tpu_custom_call.1} parent=39 // pred_check
          %p500 = pneg %p92
        $region42: #{tpu_custom_call.1} parent=39 // pred_check_branch
          %502 = sbr.rel (%p500) target = $region44
        $region43: #{tpu_custom_call.1} parent=39 // pred_region
          %s503 = sand.u32 %s77, 1
          %s504 = scalar_lea.sflag [#allocation3], %s503
          %s505 = sand.u32 %s77, 1
          %s506 = scalar_lea.vmem [#allocation2], %s505
          %507 = dma.done %s504, 16
        $region44: #{tpu_custom_call.1} parent=39 // pred_fallthru
          _
        // Predicated region
        $region45: #{tpu_custom_call.1} parent=39 // pred_check
          %p508 = pneg %p118
        $region46: #{tpu_custom_call.1} parent=39 // pred_check_branch
          %510 = sbr.rel (%p508) target = $region48
        $region47: #{tpu_custom_call.1} parent=39 // pred_region
          %s511 = sand.u32 %s103, 1
          %s512 = scalar_lea.sflag [#allocation5], %s511
          %s513 = sand.u32 %s103, 1
          %s514 = scalar_lea.vmem [#allocation4], %s513
          %515 = dma.done %s512, 16
        $region48: #{tpu_custom_call.1} parent=39 // pred_fallthru
          _
      $region40: #{tpu_custom_call.1} parent=5 // pred_fallthru
        _
    $region6: #{tpu_custom_call.1} parent=1 // loop_footer
      %s20 = sadd.s32 1, %s16
    $region7: #{tpu_custom_call.1} parent=1 // loop_footer_branch
      %15 = sbr.rel target = $region3
    $region8: #{tpu_custom_call.1} parent=1 // loop_exit
      _
    %516 = vsyncpa [#allocation3], 1
    %s517 = scalar_lea.sflag [#allocation3], 1
    %518 = vsyncpa %s517, 1
    %519 = vsyncpa [#allocation5], 1
    %s520 = scalar_lea.sflag [#allocation5], 1
    %521 = vsyncpa %s520, 1

</llo_original>
